<compile_context>
chip_gen: v7x
topology: tpu7x:2x2x1
jax: 0.10.0
libtpu: 0.0.40
codegen_flags: <defaults>
</compile_context>

<pallas_src>
import jax
import jax.numpy as jnp
from jax.experimental import pallas as pl
from jax.experimental.pallas import tpu as pltpu

LANE = 128


def temporal_kernel(x_ref, w0_ref, wr_ref, b_ref, o_ref):
    """All layers of Temporal for one batch tile.

    x_ref : (Bt, T, Cin)      unpadded input tile (f32)
    w0_ref: (3, Cin, C)       layer-0 per-tap weights (bf16, Cout lane-padded)
    wr_ref: (max(L-1,1), 3, C, C)  remaining layers' per-tap weights (bf16, zero-padded)
    b_ref : (L, 1, C)         per-layer bias (f32, padded lanes are 0)
    o_ref : (Bt, T, C)        lane-padded output tile (f32)
    """
    Bt, T, Cin = x_ref.shape
    C = o_ref.shape[-1]
    L = b_ref.shape[0]
    M = Bt * T

    # Row masks over the folded (batch, time) axis.  pltpu.roll is circular, so zero the
    # rows where a k=3 tap would wrap across t=0 / t=T-1 (this also zeroes any
    # cross-batch rows introduced by folding batch into M).
    t_idx = jax.lax.broadcasted_iota(jnp.int32, (M, 1), 0) % T
    first_row = t_idx == 0
    last_row = t_idx == T - 1

    def conv_relu(h, w_prev, w_cur, w_next, bias):
        # h: (M, K) f32.  One bf16 cast feeds all three MXU matmuls; the temporal shift
        # commutes with the right-matmul, so shift the outputs on the XLU instead of
        # building shifted input copies.
        hb = h.astype(jnp.bfloat16)
        p_prev = jnp.dot(hb, w_prev, preferred_element_type=jnp.float32)
        p_cur = jnp.dot(hb, w_cur, preferred_element_type=jnp.float32)
        p_next = jnp.dot(hb, w_next, preferred_element_type=jnp.float32)
        acc = p_cur + bias
        acc = acc + jnp.where(first_row, 0.0, pltpu.roll(p_prev, 1, 0))
        acc = acc + jnp.where(last_row, 0.0, pltpu.roll(p_next, M - 1, 0))
        return jnp.maximum(acc, 0.0)          # bias + ReLU stay f32 on the accumulator

    h = conv_relu(x_ref[...].reshape(M, Cin),
                  w0_ref[0], w0_ref[1], w0_ref[2], b_ref[0])
    for l in range(1, L):                     # static unroll; L is small
        h = conv_relu(h, wr_ref[l - 1, 0], wr_ref[l - 1, 1], wr_ref[l - 1, 2], b_ref[l])

    o_ref[...] = h.reshape(Bt, T, C).astype(o_ref.dtype)


def _round_up(n, m):
    return ((n + m - 1) // m) * m


def _pad_to(a, axis, target):
    pad = target - a.shape[axis]
    if pad <= 0:
        return a
    widths = [(0, 0)] * a.ndim
    widths[axis] = (0, pad)
    return jnp.pad(a, widths)


def temporal_forward(x, params):
    """Equivalent of Temporal.forward.  x: (B, T, input_size) -> (B, T, out_size)."""
    B, T, Cin = x.shape
    L = len(params)
    Cout = params[-1][1].shape[-1]

    # Uniform lane-dense channel width for every post-layer-0 activation / weight.
    widths = [w.shape[2] for w, _ in params] + [w.shape[1] for w, _ in params[1:]]
    C = _round_up(max(widths), LANE)

    # Layer-0 keeps its true (small) Cin as the contraction dim; only Cout is lane-padded.
    w0 = _pad_to(params[0][0], 2, C).astype(jnp.bfloat16)                    # (3, Cin, C)
    if L > 1:
        wr = jnp.stack([_pad_to(_pad_to(w, 1, C), 2, C) for w, _ in params[1:]])
        wr = wr.astype(jnp.bfloat16)                                         # (L-1, 3, C, C)
    else:
        wr = jnp.zeros((1, 3, C, C), jnp.bfloat16)                           # unused dummy
    bias = jnp.stack([_pad_to(b, 1, C) for _, b in params]).astype(jnp.float32)  # (L, 1, C)
    lr = wr.shape[0]

    # Fold batch into matmul rows: smallest batch tile reaching >=256 rows, else whole B.
    bt = B
    for d in range(1, B + 1):
        if B % d == 0 and d * T >= 256:
            bt = d
            break

    flops = 2 * B * T * 3 * (Cin * C + (L - 1) * C * C)
    bytes_accessed = (4 * x.size + 4 * B * T * C
                      + 2 * (w0.size + wr.size) + 4 * bias.size)

    out = pl.pallas_call(
        temporal_kernel,
        out_shape=jax.ShapeDtypeStruct((B, T, C), x.dtype),
        grid=(B // bt,),
        in_specs=[
            pl.BlockSpec((bt, T, Cin), lambda i: (i, 0, 0)),
            pl.BlockSpec((3, Cin, C), lambda i: (0, 0, 0)),
            pl.BlockSpec((lr, 3, C, C), lambda i: (0, 0, 0, 0)),
            pl.BlockSpec((L, 1, C), lambda i: (0, 0, 0)),
        ],
        out_specs=pl.BlockSpec((bt, T, C), lambda i: (i, 0, 0)),
        compiler_params=pltpu.CompilerParams(dimension_semantics=("parallel",)),
        cost_estimate=pl.CostEstimate(flops=flops, transcendentals=0,
                                      bytes_accessed=bytes_accessed),
    )(x, w0, wr, bias)

    # Padded lanes are exactly zero (zero weight cols + zero bias + ReLU); trim to Cout.
    return out[:, :, :Cout]


def init_temporal_params(key, input_size, out_size, num_layers=3):
    """Deterministic synthetic parameters matching nn.Conv1d shapes.

    PyTorch Conv1d weight is (Cout, Cin, 3); each layer is stored as (3, Cin, Cout) so
    tap k is already the (Cin, Cout) matmul operand.  Bias is (1, Cout).
    """
    params = []
    for i in range(num_layers):
        cin = input_size if i == 0 else out_size
        key, kw, kb = jax.random.split(key, 3)
        scale = 1.0 / jnp.sqrt(cin * 3.0)
        w_pt = jax.random.normal(kw, (out_size, cin, 3), jnp.float32) * scale
        b = jax.random.normal(kb, (1, out_size), jnp.float32) * scale
        w = jnp.transpose(w_pt, (2, 1, 0))                                   # (3, Cin, Cout)
        params.append((w, b))
    return params


def temporal_reference(x, params):
    """Pure-JAX f32 reference (module semantics) for the correctness check."""
    for w, b in params:
        T = x.shape[1]
        xp = jnp.pad(x, ((0, 0), (1, 1), (0, 0)))
        y = (jnp.einsum("btc,cd->btd", xp[:, 0:T, :], w[0])
             + jnp.einsum("btc,cd->btd", xp[:, 1:T + 1, :], w[1])
             + jnp.einsum("btc,cd->btd", xp[:, 2:T + 2, :], w[2])
             + b[None, :, :])
        x = jnp.maximum(y, 0.0)
    return x


if __name__ == "__main__":
    B, T = 2, 16
    input_size, out_size, num_layers = 8, 32, 3

    key = jax.random.PRNGKey(0)
    key, kx = jax.random.split(key)
    x = jax.random.normal(kx, (B, T, input_size), jnp.float32)
    params = init_temporal_params(key, input_size, out_size, num_layers)

    out = jax.block_until_ready(temporal_forward(x, params))
    ref = temporal_reference(x, params)

    assert out.shape == ref.shape == (B, T, out_size)
    # bf16 MXU operands (f32 accumulation) vs f32 reference -> loosened tolerance.
    assert jnp.allclose(out, ref, atol=3e-2, rtol=3e-2), float(jnp.max(jnp.abs(out - ref)))

    print("KERNEL_OK")
</pallas_src>

<mosaic_0001>
module attributes {stable_mosaic.version = 11 : i64} {
  func.func @temporal_kernel(%arg0: i32, %arg1: memref<2x16x8xf32, #tpu.memory_space<vmem>>, %arg2: memref<3x8x128xbf16, #tpu.memory_space<vmem>>, %arg3: memref<2x3x128x128xbf16, #tpu.memory_space<vmem>>, %arg4: memref<3x1x128xf32, #tpu.memory_space<vmem>>, %arg5: memref<2x16x128xf32, #tpu.memory_space<vmem>>) attributes {dimension_semantics = [#tpu.dimension_semantics<parallel>], iteration_bounds = array<i64: 1>, scalar_prefetch = 0 : i64, scratch_operands = 0 : i64, tpu.core_type = #tpu.core_type<tc>, window_params = [{transform_indices = @transform_0, window_bounds = array<i64: 2, 16, 8>}, {pipeline_mode = #tpu.pipeline_mode<synchronous>, transform_indices = @transform_1, window_bounds = array<i64: 3, 8, 128>}, {pipeline_mode = #tpu.pipeline_mode<synchronous>, transform_indices = @transform_2, window_bounds = array<i64: 2, 3, 128, 128>}, {pipeline_mode = #tpu.pipeline_mode<synchronous>, transform_indices = @transform_3, window_bounds = array<i64: 3, 1, 128>}, {transform_indices = @transform_4, window_bounds = array<i64: 2, 16, 128>}]} {
    %0 = tpu.iota {dimensions = array<i32: 0>} : vector<32x1xi32>
    %c16_i32 = arith.constant 16 : i32
    %c0_i32 = arith.constant 0 : i32
    %1 = arith.cmpi eq, %c16_i32, %c0_i32 : i32
    %c1_i32 = arith.constant 1 : i32
    %2 = arith.select %1, %c1_i32, %c16_i32 : i32
    %3 = vector.broadcast %2 : i32 to vector<32x1xi32>
    %4 = arith.remsi %0, %3 : vector<32x1xi32>
    %c0_i32_0 = arith.constant 0 : i32
    %5 = vector.broadcast %c0_i32_0 : i32 to vector<32x1xi32>
    %6 = arith.cmpi ne, %4, %5 : vector<32x1xi32>
    %c0_i32_1 = arith.constant 0 : i32
    %7 = vector.broadcast %c0_i32_1 : i32 to vector<32x1xi32>
    %8 = arith.cmpi slt, %4, %7 : vector<32x1xi32>
    %c0_i32_2 = arith.constant 0 : i32
    %9 = arith.cmpi slt, %2, %c0_i32_2 : i32
    %10 = vector.broadcast %9 : i1 to vector<32x1xi1>
    %11 = vector.broadcast %10 : vector<32x1xi1> to vector<32x1xi1>
    %12 = arith.xori %8, %11 : vector<32x1xi1>
    %13 = arith.andi %12, %6 : vector<32x1xi1>
    %14 = vector.broadcast %2 : i32 to vector<32x1xi32>
    %15 = arith.addi %4, %14 : vector<32x1xi32>
    %16 = arith.select %13, %15, %4 : vector<32x1xi1>, vector<32x1xi32>
    %c0_i32_3 = arith.constant 0 : i32
    %17 = vector.broadcast %c0_i32_3 : i32 to vector<32x1xi32>
    %18 = arith.cmpi eq, %16, %17 : vector<32x1xi32>
    %c15_i32 = arith.constant 15 : i32
    %19 = vector.broadcast %c15_i32 : i32 to vector<32x1xi32>
    %20 = arith.cmpi eq, %16, %19 : vector<32x1xi32>
    %c0 = arith.constant 0 : index
    %c0_4 = arith.constant 0 : index
    %c0_5 = arith.constant 0 : index
    %21 = vector.load %arg1[%c0, %c0_4, %c0_5] : memref<2x16x8xf32, #tpu.memory_space<vmem>>, vector<2x16x8xf32>
    %22 = vector.shape_cast %21 : vector<2x16x8xf32> to vector<32x8xf32>
    %c0_6 = arith.constant 0 : index
    %c0_7 = arith.constant 0 : index
    %c0_8 = arith.constant 0 : index
    %23 = vector.load %arg2[%c0_6, %c0_7, %c0_8] : memref<3x8x128xbf16, #tpu.memory_space<vmem>>, vector<1x8x128xbf16>
    %24 = vector.shape_cast %23 : vector<1x8x128xbf16> to vector<8x128xbf16>
    %c1 = arith.constant 1 : index
    %c0_9 = arith.constant 0 : index
    %c0_10 = arith.constant 0 : index
    %25 = vector.load %arg2[%c1, %c0_9, %c0_10] : memref<3x8x128xbf16, #tpu.memory_space<vmem>>, vector<1x8x128xbf16>
    %26 = vector.shape_cast %25 : vector<1x8x128xbf16> to vector<8x128xbf16>
    %c2 = arith.constant 2 : index
    %c0_11 = arith.constant 0 : index
    %c0_12 = arith.constant 0 : index
    %27 = vector.load %arg2[%c2, %c0_11, %c0_12] : memref<3x8x128xbf16, #tpu.memory_space<vmem>>, vector<1x8x128xbf16>
    %28 = vector.shape_cast %27 : vector<1x8x128xbf16> to vector<8x128xbf16>
    %c0_13 = arith.constant 0 : index
    %c0_14 = arith.constant 0 : index
    %c0_15 = arith.constant 0 : index
    %29 = vector.load %arg4[%c0_13, %c0_14, %c0_15] : memref<3x1x128xf32, #tpu.memory_space<vmem>>, vector<1x1x128xf32>
    %30 = vector.shape_cast %29 : vector<1x1x128xf32> to vector<1x128xf32>
    %31 = arith.truncf %22 : vector<32x8xf32> to vector<32x8xbf16>
    %cst = arith.constant dense<0.000000e+00> : vector<32x128xf32>
    %32 = tpu.matmul %31, %24, %cst {dimension_numbers = #tpu.dot_dimension_numbers<[1], [0], [0], [1], [0, 0, 1, 1], [], []>} : vector<32x8xbf16>, vector<8x128xbf16>, vector<32x128xf32> -> vector<32x128xf32>
    %cst_16 = arith.constant dense<0.000000e+00> : vector<32x128xf32>
    %33 = tpu.matmul %31, %26, %cst_16 {dimension_numbers = #tpu.dot_dimension_numbers<[1], [0], [0], [1], [0, 0, 1, 1], [], []>} : vector<32x8xbf16>, vector<8x128xbf16>, vector<32x128xf32> -> vector<32x128xf32>
    %cst_17 = arith.constant dense<0.000000e+00> : vector<32x128xf32>
    %34 = tpu.matmul %31, %28, %cst_17 {dimension_numbers = #tpu.dot_dimension_numbers<[1], [0], [0], [1], [0, 0, 1, 1], [], []>} : vector<32x8xbf16>, vector<8x128xbf16>, vector<32x128xf32> -> vector<32x128xf32>
    %35 = vector.broadcast %30 : vector<1x128xf32> to vector<32x128xf32>
    %36 = arith.addf %33, %35 : vector<32x128xf32>
    %c1_i32_18 = arith.constant 1 : i32
    %37 = tpu.dynamic_rotate %32 by %c1_i32_18 dim 0 : vector<32x128xf32>, i32 -> vector<32x128xf32>
    %cst_19 = arith.constant 0.000000e+00 : f32
    %38 = vector.shape_cast %18 : vector<32x1xi1> to vector<32x1xi1>
    %39 = vector.broadcast %38 : vector<32x1xi1> to vector<32x128xi1>
    %40 = vector.broadcast %cst_19 : f32 to vector<32x128xf32>
    %41 = arith.select %39, %40, %37 : vector<32x128xi1>, vector<32x128xf32>
    %42 = arith.addf %36, %41 : vector<32x128xf32>
    %c31_i32 = arith.constant 31 : i32
    %43 = tpu.dynamic_rotate %34 by %c31_i32 dim 0 : vector<32x128xf32>, i32 -> vector<32x128xf32>
    %cst_20 = arith.constant 0.000000e+00 : f32
    %44 = vector.shape_cast %20 : vector<32x1xi1> to vector<32x1xi1>
    %45 = vector.broadcast %44 : vector<32x1xi1> to vector<32x128xi1>
    %46 = vector.broadcast %cst_20 : f32 to vector<32x128xf32>
    %47 = arith.select %45, %46, %43 : vector<32x128xi1>, vector<32x128xf32>
    %48 = arith.addf %42, %47 : vector<32x128xf32>
    %cst_21 = arith.constant 0.000000e+00 : f32
    %49 = vector.broadcast %cst_21 : f32 to vector<32x128xf32>
    %50 = arith.maximumf %48, %49 : vector<32x128xf32>
    %c0_22 = arith.constant 0 : index
    %c0_23 = arith.constant 0 : index
    %c0_24 = arith.constant 0 : index
    %c0_25 = arith.constant 0 : index
    %51 = vector.load %arg3[%c0_22, %c0_23, %c0_24, %c0_25] : memref<2x3x128x128xbf16, #tpu.memory_space<vmem>>, vector<1x1x128x128xbf16>
    %52 = vector.shape_cast %51 : vector<1x1x128x128xbf16> to vector<128x128xbf16>
    %c0_26 = arith.constant 0 : index
    %c1_27 = arith.constant 1 : index
    %c0_28 = arith.constant 0 : index
    %c0_29 = arith.constant 0 : index
    %53 = vector.load %arg3[%c0_26, %c1_27, %c0_28, %c0_29] : memref<2x3x128x128xbf16, #tpu.memory_space<vmem>>, vector<1x1x128x128xbf16>
    %54 = vector.shape_cast %53 : vector<1x1x128x128xbf16> to vector<128x128xbf16>
    %c0_30 = arith.constant 0 : index
    %c2_31 = arith.constant 2 : index
    %c0_32 = arith.constant 0 : index
    %c0_33 = arith.constant 0 : index
    %55 = vector.load %arg3[%c0_30, %c2_31, %c0_32, %c0_33] : memref<2x3x128x128xbf16, #tpu.memory_space<vmem>>, vector<1x1x128x128xbf16>
    %56 = vector.shape_cast %55 : vector<1x1x128x128xbf16> to vector<128x128xbf16>
    %c1_34 = arith.constant 1 : index
    %c0_35 = arith.constant 0 : index
    %c0_36 = arith.constant 0 : index
    %57 = vector.load %arg4[%c1_34, %c0_35, %c0_36] : memref<3x1x128xf32, #tpu.memory_space<vmem>>, vector<1x1x128xf32>
    %58 = vector.shape_cast %57 : vector<1x1x128xf32> to vector<1x128xf32>
    %59 = arith.truncf %50 : vector<32x128xf32> to vector<32x128xbf16>
    %cst_37 = arith.constant dense<0.000000e+00> : vector<32x128xf32>
    %60 = tpu.matmul %59, %52, %cst_37 {dimension_numbers = #tpu.dot_dimension_numbers<[1], [0], [0], [1], [0, 0, 1, 1], [], []>} : vector<32x128xbf16>, vector<128x128xbf16>, vector<32x128xf32> -> vector<32x128xf32>
    %cst_38 = arith.constant dense<0.000000e+00> : vector<32x128xf32>
    %61 = tpu.matmul %59, %54, %cst_38 {dimension_numbers = #tpu.dot_dimension_numbers<[1], [0], [0], [1], [0, 0, 1, 1], [], []>} : vector<32x128xbf16>, vector<128x128xbf16>, vector<32x128xf32> -> vector<32x128xf32>
    %cst_39 = arith.constant dense<0.000000e+00> : vector<32x128xf32>
    %62 = tpu.matmul %59, %56, %cst_39 {dimension_numbers = #tpu.dot_dimension_numbers<[1], [0], [0], [1], [0, 0, 1, 1], [], []>} : vector<32x128xbf16>, vector<128x128xbf16>, vector<32x128xf32> -> vector<32x128xf32>
    %63 = vector.broadcast %58 : vector<1x128xf32> to vector<32x128xf32>
    %64 = arith.addf %61, %63 : vector<32x128xf32>
    %c1_i32_40 = arith.constant 1 : i32
    %65 = tpu.dynamic_rotate %60 by %c1_i32_40 dim 0 : vector<32x128xf32>, i32 -> vector<32x128xf32>
    %cst_41 = arith.constant 0.000000e+00 : f32
    %66 = vector.shape_cast %18 : vector<32x1xi1> to vector<32x1xi1>
    %67 = vector.broadcast %66 : vector<32x1xi1> to vector<32x128xi1>
    %68 = vector.broadcast %cst_41 : f32 to vector<32x128xf32>
    %69 = arith.select %67, %68, %65 : vector<32x128xi1>, vector<32x128xf32>
    %70 = arith.addf %64, %69 : vector<32x128xf32>
    %c31_i32_42 = arith.constant 31 : i32
    %71 = tpu.dynamic_rotate %62 by %c31_i32_42 dim 0 : vector<32x128xf32>, i32 -> vector<32x128xf32>
    %cst_43 = arith.constant 0.000000e+00 : f32
    %72 = vector.shape_cast %20 : vector<32x1xi1> to vector<32x1xi1>
    %73 = vector.broadcast %72 : vector<32x1xi1> to vector<32x128xi1>
    %74 = vector.broadcast %cst_43 : f32 to vector<32x128xf32>
    %75 = arith.select %73, %74, %71 : vector<32x128xi1>, vector<32x128xf32>
    %76 = arith.addf %70, %75 : vector<32x128xf32>
    %cst_44 = arith.constant 0.000000e+00 : f32
    %77 = vector.broadcast %cst_44 : f32 to vector<32x128xf32>
    %78 = arith.maximumf %76, %77 : vector<32x128xf32>
    %c1_45 = arith.constant 1 : index
    %c0_46 = arith.constant 0 : index
    %c0_47 = arith.constant 0 : index
    %c0_48 = arith.constant 0 : index
    %79 = vector.load %arg3[%c1_45, %c0_46, %c0_47, %c0_48] : memref<2x3x128x128xbf16, #tpu.memory_space<vmem>>, vector<1x1x128x128xbf16>
    %80 = vector.shape_cast %79 : vector<1x1x128x128xbf16> to vector<128x128xbf16>
    %c1_49 = arith.constant 1 : index
    %c1_50 = arith.constant 1 : index
    %c0_51 = arith.constant 0 : index
    %c0_52 = arith.constant 0 : index
    %81 = vector.load %arg3[%c1_49, %c1_50, %c0_51, %c0_52] : memref<2x3x128x128xbf16, #tpu.memory_space<vmem>>, vector<1x1x128x128xbf16>
    %82 = vector.shape_cast %81 : vector<1x1x128x128xbf16> to vector<128x128xbf16>
    %c1_53 = arith.constant 1 : index
    %c2_54 = arith.constant 2 : index
    %c0_55 = arith.constant 0 : index
    %c0_56 = arith.constant 0 : index
    %83 = vector.load %arg3[%c1_53, %c2_54, %c0_55, %c0_56] : memref<2x3x128x128xbf16, #tpu.memory_space<vmem>>, vector<1x1x128x128xbf16>
    %84 = vector.shape_cast %83 : vector<1x1x128x128xbf16> to vector<128x128xbf16>
    %c2_57 = arith.constant 2 : index
    %c0_58 = arith.constant 0 : index
    %c0_59 = arith.constant 0 : index
    %85 = vector.load %arg4[%c2_57, %c0_58, %c0_59] : memref<3x1x128xf32, #tpu.memory_space<vmem>>, vector<1x1x128xf32>
    %86 = vector.shape_cast %85 : vector<1x1x128xf32> to vector<1x128xf32>
    %87 = arith.truncf %78 : vector<32x128xf32> to vector<32x128xbf16>
    %cst_60 = arith.constant dense<0.000000e+00> : vector<32x128xf32>
    %88 = tpu.matmul %87, %80, %cst_60 {dimension_numbers = #tpu.dot_dimension_numbers<[1], [0], [0], [1], [0, 0, 1, 1], [], []>} : vector<32x128xbf16>, vector<128x128xbf16>, vector<32x128xf32> -> vector<32x128xf32>
    %cst_61 = arith.constant dense<0.000000e+00> : vector<32x128xf32>
    %89 = tpu.matmul %87, %82, %cst_61 {dimension_numbers = #tpu.dot_dimension_numbers<[1], [0], [0], [1], [0, 0, 1, 1], [], []>} : vector<32x128xbf16>, vector<128x128xbf16>, vector<32x128xf32> -> vector<32x128xf32>
    %cst_62 = arith.constant dense<0.000000e+00> : vector<32x128xf32>
    %90 = tpu.matmul %87, %84, %cst_62 {dimension_numbers = #tpu.dot_dimension_numbers<[1], [0], [0], [1], [0, 0, 1, 1], [], []>} : vector<32x128xbf16>, vector<128x128xbf16>, vector<32x128xf32> -> vector<32x128xf32>
    %91 = vector.broadcast %86 : vector<1x128xf32> to vector<32x128xf32>
    %92 = arith.addf %89, %91 : vector<32x128xf32>
    %c1_i32_63 = arith.constant 1 : i32
    %93 = tpu.dynamic_rotate %88 by %c1_i32_63 dim 0 : vector<32x128xf32>, i32 -> vector<32x128xf32>
    %cst_64 = arith.constant 0.000000e+00 : f32
    %94 = vector.shape_cast %18 : vector<32x1xi1> to vector<32x1xi1>
    %95 = vector.broadcast %94 : vector<32x1xi1> to vector<32x128xi1>
    %96 = vector.broadcast %cst_64 : f32 to vector<32x128xf32>
    %97 = arith.select %95, %96, %93 : vector<32x128xi1>, vector<32x128xf32>
    %98 = arith.addf %92, %97 : vector<32x128xf32>
    %c31_i32_65 = arith.constant 31 : i32
    %99 = tpu.dynamic_rotate %90 by %c31_i32_65 dim 0 : vector<32x128xf32>, i32 -> vector<32x128xf32>
    %cst_66 = arith.constant 0.000000e+00 : f32
    %100 = vector.shape_cast %20 : vector<32x1xi1> to vector<32x1xi1>
    %101 = vector.broadcast %100 : vector<32x1xi1> to vector<32x128xi1>
    %102 = vector.broadcast %cst_66 : f32 to vector<32x128xf32>
    %103 = arith.select %101, %102, %99 : vector<32x128xi1>, vector<32x128xf32>
    %104 = arith.addf %98, %103 : vector<32x128xf32>
    %cst_67 = arith.constant 0.000000e+00 : f32
    %105 = vector.broadcast %cst_67 : f32 to vector<32x128xf32>
    %106 = arith.maximumf %104, %105 : vector<32x128xf32>
    %107 = vector.shape_cast %106 : vector<32x128xf32> to vector<2x16x128xf32>
    %c0_68 = arith.constant 0 : index
    %c0_69 = arith.constant 0 : index
    %c0_70 = arith.constant 0 : index
    %108 = vector.load %arg5[%c0_68, %c0_69, %c0_70] : memref<2x16x128xf32, #tpu.memory_space<vmem>>, vector<2x16x128xf32>
    tpu.vector_store %arg5[%c0_68, %c0_69, %c0_70], %107 {strides = array<i32>} : memref<2x16x128xf32, #tpu.memory_space<vmem>>, vector<2x16x128xf32>,
    return
  }
  func.func @transform_0(%arg0: i32) -> (i32, i32, i32) {
    %c0_i32 = arith.constant 0 : i32
    %c0_i32_0 = arith.constant 0 : i32
    %c0_i32_1 = arith.constant 0 : i32
    return %arg0, %c0_i32, %c0_i32_0 : i32, i32, i32
  }
  func.func @transform_1(%arg0: i32) -> (i32, i32, i32) {
    %c0_i32 = arith.constant 0 : i32
    %c0_i32_0 = arith.constant 0 : i32
    %c0_i32_1 = arith.constant 0 : i32
    %c0_i32_2 = arith.constant 0 : i32
    return %c0_i32, %c0_i32_0, %c0_i32_1 : i32, i32, i32
  }
  func.func @transform_2(%arg0: i32) -> (i32, i32, i32, i32) {
    %c0_i32 = arith.constant 0 : i32
    %c0_i32_0 = arith.constant 0 : i32
    %c0_i32_1 = arith.constant 0 : i32
    %c0_i32_2 = arith.constant 0 : i32
    %c0_i32_3 = arith.constant 0 : i32
    return %c0_i32, %c0_i32_0, %c0_i32_1, %c0_i32_2 : i32, i32, i32, i32
  }
  func.func @transform_3(%arg0: i32) -> (i32, i32, i32) {
    %c0_i32 = arith.constant 0 : i32
    %c0_i32_0 = arith.constant 0 : i32
    %c0_i32_1 = arith.constant 0 : i32
    %c0_i32_2 = arith.constant 0 : i32
    return %c0_i32, %c0_i32_0, %c0_i32_1 : i32, i32, i32
  }
  func.func @transform_4(%arg0: i32) -> (i32, i32, i32) {
    %c0_i32 = arith.constant 0 : i32
    %c0_i32_0 = arith.constant 0 : i32
    %c0_i32_1 = arith.constant 0 : i32
    return %arg0, %c0_i32, %c0_i32_0 : i32, i32, i32
  }
}

</mosaic_0001>

<llo_original>
// kernel: tpu_custom_call.1
$region0: #{tpu_custom_call.1}
  #allocation0 [shape = 'u32[]', space=smem, size = 0x4, offset = 0x4, fixed_abs, tag = 'smem constant byte address 0x4 - core index']
  #allocation1 [shape = 'u32[144,128]{1,0:T(1,128)}', space=vmem, size = 0x12000, scoped, tag = 'internal scratch']
  %s0 = inlined_call_operand.vmem [shape: f32[2,16,8], index: 0, kind: input, shape index: {}]
  %s1 = inlined_call_operand.vmem [shape: bf16[3,8,128], index: 1, kind: input, shape index: {}]
  %s2 = inlined_call_operand.hbm [shape: bf16[2,3,128,128], index: 2, kind: input, shape index: {}]
  %s3 = inlined_call_operand.vmem [shape: f32[3,1,128], index: 3, kind: input, shape index: {}]
  %s4 = inlined_call_operand.hbm [shape: f32[2,16,128], index: 4, kind: output, shape index: {}]
  %s5 = sld [smem:[#allocation0]]
  $region30: #{tpu_custom_call.1} parent=0
    _
  %s7 = ssub.s32 1, %s5
  %s8 = scalar_select 0, %s7, %s5
  $region1: #{tpu_custom_call.1} parent=0
    #allocation2 [shape = 'u8[196608]{0}', space=vmem, size = 0x30000, scoped, tag = 'input window, operand 2, single buffered']
    #allocation3 [shape = 's32[1]{0}', space=sflag, size = 0x4, scoped, tag = 'scoped memory for tpu_custom_call.1']
    #allocation4 [shape = 's32[1]{0}', space=sflag, size = 0x4, scoped, tag = 'scoped memory for tpu_custom_call.1']
    #allocation5 [shape = 'u8[16384]{0}', space=vmem, size = 0x4000, scoped, tag = 'output window, operand 0, single buffered']
    %9 = vsyncpa [#allocation3], 0
    %10 = vsyncpa [#allocation4], 0
    // Predicated region
    $region2: #{tpu_custom_call.1} parent=1 // pred_check
      _
    $region3: #{tpu_custom_call.1} parent=1 // pred_check_branch
      %12 = sbr.rel (0) target = $region5
    $region4: #{tpu_custom_call.1} parent=1 // pred_region
      _
    $region5: #{tpu_custom_call.1} parent=1 // pred_fallthru
      _
    // Predicated region
    $region6: #{tpu_custom_call.1} parent=1 // pred_check
      _
    $region7: #{tpu_custom_call.1} parent=1 // pred_check_branch
      %14 = sbr.rel (0) target = $region9
    $region8: #{tpu_custom_call.1} parent=1 // pred_region
      _
    $region9: #{tpu_custom_call.1} parent=1 // pred_fallthru
      _
    // Predicated region
    $region10: #{tpu_custom_call.1} parent=1 // pred_check
      _
    $region11: #{tpu_custom_call.1} parent=1 // pred_check_branch
      %16 = sbr.rel (0) target = $region13
    $region12: #{tpu_custom_call.1} parent=1 // pred_region
      %s18 = ssub.s32 6144, 6144
      %19 = vsyncadd [#allocation3], %s18
      %s20 = sshll.u32 [#allocation2], 4
      %s21 = int_to_ptr.vmem [resolvable:$true] %s20
      %26 = dma.hbm_to_vmem [thread:$0]  %s2, 6144, %s21, [#allocation3], 64, 64, 4
    $region13: #{tpu_custom_call.1} parent=1 // pred_fallthru
      _
    // Predicated region
    $region14: #{tpu_custom_call.1} parent=1 // pred_check
      _
    $region15: #{tpu_custom_call.1} parent=1 // pred_check_branch
      %28 = sbr.rel (0) target = $region17
    $region16: #{tpu_custom_call.1} parent=1 // pred_region
      _
    $region17: #{tpu_custom_call.1} parent=1 // pred_fallthru
      _
    // Predicated region
    $region18: #{tpu_custom_call.1} parent=1 // pred_check
      _
    $region19: #{tpu_custom_call.1} parent=1 // pred_check_branch
      %30 = sbr.rel (0) target = $region21
    $region20: #{tpu_custom_call.1} parent=1 // pred_region
      %31 = dma.done [#allocation3], 6144
    $region21: #{tpu_custom_call.1} parent=1 // pred_fallthru
      _
    %v33 = vlaneseq
    %v34 = vshrl.u32 %v33, 7
    %v35 = vadd.s32 %v34, 8
    %v36 = vadd.s32 %v34, 16
    %v37 = vadd.s32 %v34, 24
    %vm38 = vcmp.lt.s32.totalorder %v34, 0
    %v39 = vsub.s32 0, %v34
    %v40 = vsel %vm38, %v39, %v34
    %v41 = vshrl.u32 %v40, 4
    %v42 = vand.u32 %v40, 15
    %v43 = vsub.s32 0, %v42
    %v44 = vsel %vm38, %v43, %v42
    %vm45 = vcmp.lt.s32.totalorder %v35, 0
    %v46 = vsub.s32 0, %v35
    %v47 = vsel %vm45, %v46, %v35
    %v48 = vshrl.u32 %v47, 4
    %v49 = vand.u32 %v47, 15
    %v50 = vsub.s32 0, %v49
    %v51 = vsel %vm45, %v50, %v49
    %vm52 = vcmp.lt.s32.totalorder %v36, 0
    %v53 = vsub.s32 0, %v36
    %v54 = vsel %vm52, %v53, %v36
    %v55 = vshrl.u32 %v54, 4
    %v56 = vand.u32 %v54, 15
    %v57 = vsub.s32 0, %v56
    %v58 = vsel %vm52, %v57, %v56
    %vm59 = vcmp.lt.s32.totalorder %v37, 0
    %v60 = vsub.s32 0, %v37
    %v61 = vsel %vm59, %v60, %v37
    %v62 = vshrl.u32 %v61, 4
    %v63 = vand.u32 %v61, 15
    %v64 = vsub.s32 0, %v63
    %v65 = vsel %vm59, %v64, %v63
    %vm66 = vcmp.ne.s32.totalorder %v44, 0
    %vm67 = vcmp.ne.s32.totalorder %v51, 0
    %vm68 = vcmp.ne.s32.totalorder %v58, 0
    %vm69 = vcmp.ne.s32.totalorder %v65, 0
    %vm70 = vcmp.lt.s32.totalorder %v44, 0
    %vm71 = vcmp.lt.s32.totalorder %v51, 0
    %vm72 = vcmp.lt.s32.totalorder %v58, 0
    %vm73 = vcmp.lt.s32.totalorder %v65, 0
    %vm74 = vmand %vm70, %vm66
    %vm75 = vmand %vm71, %vm67
    %vm76 = vmand %vm72, %vm68
    %vm77 = vmand %vm73, %vm69
    %v78 = vadd.s32 %v44, 16
    %v79 = vadd.s32 %v51, 16
    %v80 = vadd.s32 %v58, 16
    %v81 = vadd.s32 %v65, 16
    %v82 = vsel %vm74, %v78, %v44
    %v83 = vsel %vm75, %v79, %v51
    %v84 = vsel %vm76, %v80, %v58
    %v85 = vsel %vm77, %v81, %v65
    %vm86 = vcmp.eq.s32.totalorder %v82, 0
    %vm87 = vcmp.eq.s32.totalorder %v83, 0
    %vm88 = vcmp.eq.s32.totalorder %v84, 0
    %vm89 = vcmp.eq.s32.totalorder %v85, 0
    %vm90 = vcmp.eq.s32.totalorder %v82, 15
    %vm91 = vcmp.eq.s32.totalorder %v83, 15
    %vm92 = vcmp.eq.s32.totalorder %v84, 15
    %vm93 = vcmp.eq.s32.totalorder %v85, 15
    %v94 = vld [vmem:[%s0] sm:$0xff]
    %v95 = vld [vmem:[%s0 + $0x8] sm:$0xff]
    %v96 = vld [vmem:[%s0 + $0x10] sm:$0xff]
    %v97 = vld [vmem:[%s0 + $0x18] sm:$0xff]
    %v98 = vld [vmem:[%s1] sm:$0xf]
    %s99 = scalar_lea.vmem %s1, 4
    %v100 = vld [vmem:[%s99] sm:$0xf]
    %s101 = scalar_lea.vmem %s1, 8
    %v102 = vld [vmem:[%s101] sm:$0xf]
    %v103 = vld [vmem:[%s3] sm:$0x1]
    %v104 = vpack.c.bf16 %v95, %v94
    %v105 = vpack.c.bf16 %v97, %v96
    %vm106 = vcmask 64512
    %v108 = vsel %vm106, %v104, 0
    %v111 = vsel %vm106, %v105, 0
    %vm113 = vcmask 1043456
    %v115 = vsel %vm113, %v98, 0
    %117 = vmatprep.subr.bf16.mxu0 0
    %118 = vmatpush1.bf16.msra.mxu0 %v115
    %119 = vmatprep.subr.bf16.mxu0 0
    %120 = vmatpush1.bf16.msra.mxu0 0
    %121 = vmatprep.subr.bf16.mxu0 0
    %122 = vmatpush1.bf16.msra.mxu0 0
    %123 = vmatprep.subr.bf16.mxu0 0
    %124 = vmatpush1.bf16.msra.mxu0 0
    %125 = vmatprep.subr.bf16.mxu0 0
    %126 = vmatpush1.bf16.msra.mxu0 0
    %127 = vmatprep.subr.bf16.mxu0 0
    %128 = vmatpush1.bf16.msra.mxu0 0
    %129 = vmatprep.subr.bf16.mxu0 0
    %130 = vmatpush1.bf16.msra.mxu0 0
    %131 = vmatprep.subr.bf16.mxu0 0
    %132 = vmatpush1.bf16.msra.mxu0 0
    %133 = vmatprep.subr.bf16.mxu0 0
    %134 = vmatpush1.bf16.msra.mxu0 0
    %135 = vmatprep.subr.bf16.mxu0 0
    %136 = vmatpush1.bf16.msra.mxu0 0
    %137 = vmatprep.subr.bf16.mxu0 0
    %138 = vmatpush1.bf16.msra.mxu0 0
    %139 = vmatprep.subr.bf16.mxu0 0
    %140 = vmatpush1.bf16.msra.mxu0 0
    %141 = vmatprep.subr.bf16.mxu0 0
    %142 = vmatpush1.bf16.msra.mxu0 0
    %143 = vmatprep.subr.bf16.mxu0 0
    %144 = vmatpush1.bf16.msra.mxu0 0
    %145 = vmatprep.subr.bf16.mxu0 0
    %146 = vmatpush1.bf16.msra.mxu0 0
    %147 = vmatprep.subr.bf16.mxu0 0
    %148 = vmatpush1.bf16.msra.mxu0 0
    %149 = vmatprep.mubr.bf16.mxu0 0
    %150 = vmatmul.mubr.bf16.gmra.mrb[0].mxu0 %v108
    %v151 = vpop.f32.mrb[0].mxu0
    %v152 = vadd.f32 0.0, %v151
    %v153 = vpop.f32.mrb[0].mxu0
    %v154 = vpop.f32.mrb[0].mxu0
    %v155 = vadd.f32 0.0, %v154
    %v156 = vpop.f32.mrb[0].mxu0
    %157 = vmatprep.mubr.bf16.mxu0 0
    %158 = vmatmul.mubr.bf16.gmra.mrb[0].mxu0 %v111
    %v159 = vpop.f32.mrb[0].mxu0
    %v160 = vadd.f32 0.0, %v159
    %v161 = vpop.f32.mrb[0].mxu0
    %v162 = vpop.f32.mrb[0].mxu0
    %v163 = vadd.f32 0.0, %v162
    %v164 = vpop.f32.mrb[0].mxu0
    %165 = vdwg.mxu0
    %v167 = vsel %vm113, %v102, 0
    %169 = vmatprep.subr.bf16.mxu0 0
    %170 = vmatpush1.bf16.msra.mxu0 %v167
    %171 = vmatprep.subr.bf16.mxu0 0
    %172 = vmatpush1.bf16.msra.mxu0 0
    %173 = vmatprep.subr.bf16.mxu0 0
    %174 = vmatpush1.bf16.msra.mxu0 0
    %175 = vmatprep.subr.bf16.mxu0 0
    %176 = vmatpush1.bf16.msra.mxu0 0
    %177 = vmatprep.subr.bf16.mxu0 0
    %178 = vmatpush1.bf16.msra.mxu0 0
    %179 = vmatprep.subr.bf16.mxu0 0
    %180 = vmatpush1.bf16.msra.mxu0 0
    %181 = vmatprep.subr.bf16.mxu0 0
    %182 = vmatpush1.bf16.msra.mxu0 0
    %183 = vmatprep.subr.bf16.mxu0 0
    %184 = vmatpush1.bf16.msra.mxu0 0
    %185 = vmatprep.subr.bf16.mxu0 0
    %186 = vmatpush1.bf16.msra.mxu0 0
    %187 = vmatprep.subr.bf16.mxu0 0
    %188 = vmatpush1.bf16.msra.mxu0 0
    %189 = vmatprep.subr.bf16.mxu0 0
    %190 = vmatpush1.bf16.msra.mxu0 0
    %191 = vmatprep.subr.bf16.mxu0 0
    %192 = vmatpush1.bf16.msra.mxu0 0
    %193 = vmatprep.subr.bf16.mxu0 0
    %194 = vmatpush1.bf16.msra.mxu0 0
    %195 = vmatprep.subr.bf16.mxu0 0
    %196 = vmatpush1.bf16.msra.mxu0 0
    %197 = vmatprep.subr.bf16.mxu0 0
    %198 = vmatpush1.bf16.msra.mxu0 0
    %199 = vmatprep.subr.bf16.mxu0 0
    %200 = vmatpush1.bf16.msra.mxu0 0
    %201 = vmatprep.mubr.bf16.mxu0 0
    %202 = vmatmul.mubr.bf16.gmra.mrb[0].mxu0 %v108
    %v203 = vpop.f32.mrb[0].mxu0
    %v204 = vadd.f32 0.0, %v203
    %v205 = vpop.f32.mrb[0].mxu0
    %v206 = vpop.f32.mrb[0].mxu0
    %v207 = vadd.f32 0.0, %v206
    %v208 = vpop.f32.mrb[0].mxu0
    %209 = vmatprep.mubr.bf16.mxu0 0
    %210 = vmatmul.mubr.bf16.gmra.mrb[0].mxu0 %v111
    %v211 = vpop.f32.mrb[0].mxu0
    %v212 = vadd.f32 0.0, %v211
    %v213 = vpop.f32.mrb[0].mxu0
    %v214 = vpop.f32.mrb[0].mxu0
    %v215 = vadd.f32 0.0, %v214
    %v216 = vpop.f32.mrb[0].mxu0
    %217 = vdwg.mxu0
    %v219 = vlaneseq
    %v220 = vshrl.u32 %v219, 7
    %v221 = vsub.s32 0, %v220
    %v222 = vrot.slane %v103, %v221
    %v225 = vsel %vm113, %v100, 0
    %227 = vmatprep.subr.bf16.mxu0 0
    %228 = vmatpush1.bf16.msra.mxu0 %v225
    %229 = vmatprep.subr.bf16.mxu0 0
    %230 = vmatpush1.bf16.msra.mxu0 0
    %231 = vmatprep.subr.bf16.mxu0 0
    %232 = vmatpush1.bf16.msra.mxu0 0
    %233 = vmatprep.subr.bf16.mxu0 0
    %234 = vmatpush1.bf16.msra.mxu0 0
    %235 = vmatprep.subr.bf16.mxu0 0
    %236 = vmatpush1.bf16.msra.mxu0 0
    %237 = vmatprep.subr.bf16.mxu0 0
    %238 = vmatpush1.bf16.msra.mxu0 0
    %239 = vmatprep.subr.bf16.mxu0 0
    %240 = vmatpush1.bf16.msra.mxu0 0
    %241 = vmatprep.subr.bf16.mxu0 0
    %242 = vmatpush1.bf16.msra.mxu0 0
    %243 = vmatprep.subr.bf16.mxu0 0
    %244 = vmatpush1.bf16.msra.mxu0 0
    %245 = vmatprep.subr.bf16.mxu0 0
    %246 = vmatpush1.bf16.msra.mxu0 0
    %247 = vmatprep.subr.bf16.mxu0 0
    %248 = vmatpush1.bf16.msra.mxu0 0
    %249 = vmatprep.subr.bf16.mxu0 0
    %250 = vmatpush1.bf16.msra.mxu0 0
    %251 = vmatprep.subr.bf16.mxu0 0
    %252 = vmatpush1.bf16.msra.mxu0 0
    %253 = vmatprep.subr.bf16.mxu0 0
    %254 = vmatpush1.bf16.msra.mxu0 0
    %255 = vmatprep.subr.bf16.mxu0 0
    %256 = vmatpush1.bf16.msra.mxu0 0
    %257 = vmatprep.subr.bf16.mxu0 0
    %258 = vmatpush1.bf16.msra.mxu0 0
    %259 = vmatprep.mubr.bf16.mxu0 0
    %260 = vmatmul.mubr.bf16.gmra.mrb[0].mxu0 %v108
    %v261 = vpop.f32.mrb[0].mxu0
    %v262 = vadd.f32 %v222, %v261
    %v263 = vpop.f32.mrb[0].mxu0
    %v264 = vpop.f32.mrb[0].mxu0
    %v265 = vadd.f32 %v222, %v264
    %v266 = vpop.f32.mrb[0].mxu0
    %267 = vmatprep.mubr.bf16.mxu0 0
    %268 = vmatmul.mubr.bf16.gmra.mrb[0].mxu0 %v111
    %v269 = vpop.f32.mrb[0].mxu0
    %v270 = vadd.f32 %v222, %v269
    %v271 = vpop.f32.mrb[0].mxu0
    %v272 = vpop.f32.mrb[0].mxu0
    %v273 = vadd.f32 %v222, %v272
    %v274 = vpop.f32.mrb[0].mxu0
    %275 = vdwg.mxu0
    %v276 = vrot.slane %v152, 7
    %v277 = vrot.slane %v155, 7
    %v278 = vrot.slane %v160, 7
    %v279 = vrot.slane %v163, 7
    %vm280 = vcmp.lt.s32.totalorder %v34, 1
    %v281 = vsel %vm280, %v278, %v279
    %v282 = vsel %vm280, %v277, %v278
    %v283 = vsel %vm280, %v276, %v277
    %v284 = vsel %vm280, %v279, %v276
    %v285 = vsel %vm86, 1, 0
    %v286 = vsel %vm87, 1, 0
    %v287 = vsel %vm88, 1, 0
    %v288 = vsel %vm89, 1, 0
    %vm289 = vcmp.eq.s32.totalorder %v285, 1
    %vm290 = vcmp.eq.s32.totalorder %v286, 1
    %vm291 = vcmp.eq.s32.totalorder %v287, 1
    %vm292 = vcmp.eq.s32.totalorder %v288, 1
    %v293 = vsel %vm289, 0.0, %v284
    %v294 = vsel %vm290, 0.0, %v283
    %v295 = vsel %vm291, 0.0, %v282
    %v296 = vsel %vm292, 0.0, %v281
    %v297 = vadd.f32 %v262, %v293
    %v298 = vadd.f32 %v265, %v294
    %v299 = vadd.f32 %v270, %v295
    %v300 = vadd.f32 %v273, %v296
    %v301 = vrot.slane %v204, 1
    %v302 = vrot.slane %v207, 1
    %v303 = vrot.slane %v212, 1
    %v304 = vrot.slane %v215, 1
    %vm305 = vcmp.lt.s32.totalorder %v34, 7
    %v306 = vsel %vm305, %v303, %v304
    %v307 = vsel %vm305, %v302, %v303
    %v308 = vsel %vm305, %v301, %v302
    %v309 = vsel %vm305, %v304, %v301
    %v310 = vsel %vm90, 1, 0
    %v311 = vsel %vm91, 1, 0
    %v312 = vsel %vm92, 1, 0
    %v313 = vsel %vm93, 1, 0
    %vm314 = vcmp.eq.s32.totalorder %v310, 1
    %vm315 = vcmp.eq.s32.totalorder %v311, 1
    %vm316 = vcmp.eq.s32.totalorder %v312, 1
    %vm317 = vcmp.eq.s32.totalorder %v313, 1
    %v318 = vsel %vm314, 0.0, %v308
    %v319 = vsel %vm315, 0.0, %v307
    %v320 = vsel %vm316, 0.0, %v306
    %v321 = vsel %vm317, 0.0, %v309
    %v322 = vadd.f32 %v297, %v318
    %v323 = vadd.f32 %v298, %v319
    %v324 = vadd.f32 %v299, %v320
    %v325 = vadd.f32 %v300, %v321
    %v326 = vmax.f32 %v322, 0.0
    %v327 = vmax.f32 %v323, 0.0
    %v328 = vmax.f32 %v324, 0.0
    %v329 = vmax.f32 %v325, 0.0
    %v330 = vld [vmem:[#allocation2] sm:$0xf]
    %v331 = vld [vmem:[#allocation2 + $0x4] sm:$0xf]
    %v332 = vld [vmem:[#allocation2 + $0x8] sm:$0xf]
    %v333 = vld [vmem:[#allocation2 + $0xc] sm:$0xf]
    %v334 = vld [vmem:[#allocation2 + $0x10] sm:$0xf]
    %v335 = vld [vmem:[#allocation2 + $0x14] sm:$0xf]
    %v336 = vld [vmem:[#allocation2 + $0x18] sm:$0xf]
    %v337 = vld [vmem:[#allocation2 + $0x1c] sm:$0xf]
    %v338 = vld [vmem:[#allocation2 + $0x20] sm:$0xf]
    %v339 = vld [vmem:[#allocation2 + $0x24] sm:$0xf]
    %v340 = vld [vmem:[#allocation2 + $0x28] sm:$0xf]
    %v341 = vld [vmem:[#allocation2 + $0x2c] sm:$0xf]
    %v342 = vld [vmem:[#allocation2 + $0x30] sm:$0xf]
    %v343 = vld [vmem:[#allocation2 + $0x34] sm:$0xf]
    %v344 = vld [vmem:[#allocation2 + $0x38] sm:$0xf]
    %v345 = vld [vmem:[#allocation2 + $0x3c] sm:$0xf]
    %s346 = scalar_lea.vmem [#allocation2], 64
    %v347 = vld [vmem:[%s346] sm:$0xf]
    %v348 = vld [vmem:[%s346 + $0x4] sm:$0xf]
    %v349 = vld [vmem:[%s346 + $0x8] sm:$0xf]
    %v350 = vld [vmem:[%s346 + $0xc] sm:$0xf]
    %v351 = vld [vmem:[%s346 + $0x10] sm:$0xf]
    %v352 = vld [vmem:[%s346 + $0x14] sm:$0xf]
    %v353 = vld [vmem:[%s346 + $0x18] sm:$0xf]
    %v354 = vld [vmem:[%s346 + $0x1c] sm:$0xf]
    %v355 = vld [vmem:[%s346 + $0x20] sm:$0xf]
    %v356 = vld [vmem:[%s346 + $0x24] sm:$0xf]
    %v357 = vld [vmem:[%s346 + $0x28] sm:$0xf]
    %v358 = vld [vmem:[%s346 + $0x2c] sm:$0xf]
    %v359 = vld [vmem:[%s346 + $0x30] sm:$0xf]
    %v360 = vld [vmem:[%s346 + $0x34] sm:$0xf]
    %v361 = vld [vmem:[%s346 + $0x38] sm:$0xf]
    %v362 = vld [vmem:[%s346 + $0x3c] sm:$0xf]
    %s363 = scalar_lea.vmem [#allocation2], 128
    %v364 = vld [vmem:[%s363] sm:$0xf]
    %v365 = vld [vmem:[%s363 + $0x4] sm:$0xf]
    %v366 = vld [vmem:[%s363 + $0x8] sm:$0xf]
    %v367 = vld [vmem:[%s363 + $0xc] sm:$0xf]
    %v368 = vld [vmem:[%s363 + $0x10] sm:$0xf]
    %v369 = vld [vmem:[%s363 + $0x14] sm:$0xf]
    %v370 = vld [vmem:[%s363 + $0x18] sm:$0xf]
    %v371 = vld [vmem:[%s363 + $0x1c] sm:$0xf]
    %v372 = vld [vmem:[%s363 + $0x20] sm:$0xf]
    %v373 = vld [vmem:[%s363 + $0x24] sm:$0xf]
    %v374 = vld [vmem:[%s363 + $0x28] sm:$0xf]
    %v375 = vld [vmem:[%s363 + $0x2c] sm:$0xf]
    %v376 = vld [vmem:[%s363 + $0x30] sm:$0xf]
    %v377 = vld [vmem:[%s363 + $0x34] sm:$0xf]
    %v378 = vld [vmem:[%s363 + $0x38] sm:$0xf]
    %v379 = vld [vmem:[%s363 + $0x3c] sm:$0xf]
    %s380 = scalar_lea.vmem %s3, 1
    %v381 = vld [vmem:[%s380] sm:$0x1]
    %v382 = vpack.c.bf16 %v327, %v326
    %v383 = vpack.c.bf16 %v329, %v328
    %v400 = vunpack.c.l.b16 %v330
    %v401 = vunpack.c.l.b16 %v331
    %v402 = vunpack.c.l.b16 %v332
    %v403 = vunpack.c.l.b16 %v333
    %v404 = vunpack.c.l.b16 %v334
    %v405 = vunpack.c.l.b16 %v335
    %v406 = vunpack.c.l.b16 %v336
    %v407 = vunpack.c.l.b16 %v337
    %v408 = vunpack.c.l.b16 %v338
    %v409 = vunpack.c.l.b16 %v339
    %v410 = vunpack.c.l.b16 %v340
    %v411 = vunpack.c.l.b16 %v341
    %v412 = vunpack.c.l.b16 %v342
    %v413 = vunpack.c.l.b16 %v343
    %v414 = vunpack.c.l.b16 %v344
    %v415 = vunpack.c.l.b16 %v345
    %v416 = vpack.c.b16 %v401, %v400
    %v417 = vpack.c.b16 %v403, %v402
    %v418 = vpack.c.b16 %v405, %v404
    %v419 = vpack.c.b16 %v407, %v406
    %v420 = vpack.c.b16 %v409, %v408
    %v421 = vpack.c.b16 %v411, %v410
    %v422 = vpack.c.b16 %v413, %v412
    %v423 = vpack.c.b16 %v415, %v414
    %432 = vmatprep.subr.bf16.mxu0 0
    %433 = vmatpush1.bf16.msra.mxu0 %v416
    %434 = vmatprep.subr.bf16.mxu0 0
    %435 = vmatpush1.bf16.msra.mxu0 %v417
    %436 = vmatprep.subr.bf16.mxu0 0
    %437 = vmatpush1.bf16.msra.mxu0 %v418
    %438 = vmatprep.subr.bf16.mxu0 0
    %439 = vmatpush1.bf16.msra.mxu0 %v419
    %440 = vmatprep.subr.bf16.mxu0 0
    %441 = vmatpush1.bf16.msra.mxu0 %v420
    %442 = vmatprep.subr.bf16.mxu0 0
    %443 = vmatpush1.bf16.msra.mxu0 %v421
    %444 = vmatprep.subr.bf16.mxu0 0
    %445 = vmatpush1.bf16.msra.mxu0 %v422
    %446 = vmatprep.subr.bf16.mxu0 0
    %447 = vmatpush1.bf16.msra.mxu0 %v423
    %448 = vmatprep.subr.bf16.mxu0 0
    %449 = vmatpush1.bf16.msra.mxu0 0
    %450 = vmatprep.subr.bf16.mxu0 0
    %451 = vmatpush1.bf16.msra.mxu0 0
    %452 = vmatprep.subr.bf16.mxu0 0
    %453 = vmatpush1.bf16.msra.mxu0 0
    %454 = vmatprep.subr.bf16.mxu0 0
    %455 = vmatpush1.bf16.msra.mxu0 0
    %456 = vmatprep.subr.bf16.mxu0 0
    %457 = vmatpush1.bf16.msra.mxu0 0
    %458 = vmatprep.subr.bf16.mxu0 0
    %459 = vmatpush1.bf16.msra.mxu0 0
    %460 = vmatprep.subr.bf16.mxu0 0
    %461 = vmatpush1.bf16.msra.mxu0 0
    %462 = vmatprep.subr.bf16.mxu0 0
    %463 = vmatpush1.bf16.msra.mxu0 0
    %464 = vmatprep.mubr.bf16.mxu0 0
    %465 = vmatmul.mubr.bf16.gmra.mrb[0].mxu0 %v382
    %v466 = vpop.f32.mrb[0].mxu0
    %v467 = vadd.f32 0.0, %v466
    %v468 = vpop.f32.mrb[0].mxu0
    %v469 = vpop.f32.mrb[0].mxu0
    %v470 = vadd.f32 0.0, %v469
    %v471 = vpop.f32.mrb[0].mxu0
    %472 = vmatprep.mubr.bf16.mxu0 0
    %473 = vmatmul.mubr.bf16.gmra.mrb[0].mxu0 %v383
    %v474 = vpop.f32.mrb[0].mxu0
    %v475 = vadd.f32 0.0, %v474
    %v476 = vpop.f32.mrb[0].mxu0
    %v477 = vpop.f32.mrb[0].mxu0
    %v478 = vadd.f32 0.0, %v477
    %v479 = vpop.f32.mrb[0].mxu0
    %480 = vdwg.mxu0
    %v497 = vunpack.c.l.b16 %v364
    %v498 = vunpack.c.l.b16 %v365
    %v499 = vunpack.c.l.b16 %v366
    %v500 = vunpack.c.l.b16 %v367
    %v501 = vunpack.c.l.b16 %v368
    %v502 = vunpack.c.l.b16 %v369
    %v503 = vunpack.c.l.b16 %v370
    %v504 = vunpack.c.l.b16 %v371
    %v505 = vunpack.c.l.b16 %v372
    %v506 = vunpack.c.l.b16 %v373
    %v507 = vunpack.c.l.b16 %v374
    %v508 = vunpack.c.l.b16 %v375
    %v509 = vunpack.c.l.b16 %v376
    %v510 = vunpack.c.l.b16 %v377
    %v511 = vunpack.c.l.b16 %v378
    %v512 = vunpack.c.l.b16 %v379
    %v513 = vpack.c.b16 %v498, %v497
    %v514 = vpack.c.b16 %v500, %v499
    %v515 = vpack.c.b16 %v502, %v501
    %v516 = vpack.c.b16 %v504, %v503
    %v517 = vpack.c.b16 %v506, %v505
    %v518 = vpack.c.b16 %v508, %v507
    %v519 = vpack.c.b16 %v510, %v509
    %v520 = vpack.c.b16 %v512, %v511
    %529 = vmatprep.subr.bf16.mxu0 0
    %530 = vmatpush1.bf16.msra.mxu0 %v513
    %531 = vmatprep.subr.bf16.mxu0 0
    %532 = vmatpush1.bf16.msra.mxu0 %v514
    %533 = vmatprep.subr.bf16.mxu0 0
    %534 = vmatpush1.bf16.msra.mxu0 %v515
    %535 = vmatprep.subr.bf16.mxu0 0
    %536 = vmatpush1.bf16.msra.mxu0 %v516
    %537 = vmatprep.subr.bf16.mxu0 0
    %538 = vmatpush1.bf16.msra.mxu0 %v517
    %539 = vmatprep.subr.bf16.mxu0 0
    %540 = vmatpush1.bf16.msra.mxu0 %v518
    %541 = vmatprep.subr.bf16.mxu0 0
    %542 = vmatpush1.bf16.msra.mxu0 %v519
    %543 = vmatprep.subr.bf16.mxu0 0
    %544 = vmatpush1.bf16.msra.mxu0 %v520
    %545 = vmatprep.subr.bf16.mxu0 0
    %546 = vmatpush1.bf16.msra.mxu0 0
    %547 = vmatprep.subr.bf16.mxu0 0
    %548 = vmatpush1.bf16.msra.mxu0 0
    %549 = vmatprep.subr.bf16.mxu0 0
    %550 = vmatpush1.bf16.msra.mxu0 0
    %551 = vmatprep.subr.bf16.mxu0 0
    %552 = vmatpush1.bf16.msra.mxu0 0
    %553 = vmatprep.subr.bf16.mxu0 0
    %554 = vmatpush1.bf16.msra.mxu0 0
    %555 = vmatprep.subr.bf16.mxu0 0
    %556 = vmatpush1.bf16.msra.mxu0 0
    %557 = vmatprep.subr.bf16.mxu0 0
    %558 = vmatpush1.bf16.msra.mxu0 0
    %559 = vmatprep.subr.bf16.mxu0 0
    %560 = vmatpush1.bf16.msra.mxu0 0
    %561 = vmatprep.mubr.bf16.mxu0 0
    %562 = vmatmul.mubr.bf16.gmra.mrb[0].mxu0 %v382
    %v563 = vpop.f32.mrb[0].mxu0
    %v564 = vadd.f32 0.0, %v563
    %v565 = vpop.f32.mrb[0].mxu0
    %v566 = vpop.f32.mrb[0].mxu0
    %v567 = vadd.f32 0.0, %v566
    %v568 = vpop.f32.mrb[0].mxu0
    %569 = vmatprep.mubr.bf16.mxu0 0
    %570 = vmatmul.mubr.bf16.gmra.mrb[0].mxu0 %v383
    %v571 = vpop.f32.mrb[0].mxu0
    %v572 = vadd.f32 0.0, %v571
    %v573 = vpop.f32.mrb[0].mxu0
    %v574 = vpop.f32.mrb[0].mxu0
    %v575 = vadd.f32 0.0, %v574
    %v576 = vpop.f32.mrb[0].mxu0
    %577 = vdwg.mxu0
    %v579 = vlaneseq
    %v580 = vshrl.u32 %v579, 7
    %v581 = vsub.s32 0, %v580
    %v582 = vrot.slane %v381, %v581
    %v600 = vunpack.c.l.b16 %v347
    %v601 = vunpack.c.l.b16 %v348
    %v602 = vunpack.c.l.b16 %v349
    %v603 = vunpack.c.l.b16 %v350
    %v604 = vunpack.c.l.b16 %v351
    %v605 = vunpack.c.l.b16 %v352
    %v606 = vunpack.c.l.b16 %v353
    %v607 = vunpack.c.l.b16 %v354
    %v608 = vunpack.c.l.b16 %v355
    %v609 = vunpack.c.l.b16 %v356
    %v610 = vunpack.c.l.b16 %v357
    %v611 = vunpack.c.l.b16 %v358
    %v612 = vunpack.c.l.b16 %v359
    %v613 = vunpack.c.l.b16 %v360
    %v614 = vunpack.c.l.b16 %v361
    %v615 = vunpack.c.l.b16 %v362
    %v616 = vpack.c.b16 %v601, %v600
    %v617 = vpack.c.b16 %v603, %v602
    %v618 = vpack.c.b16 %v605, %v604
    %v619 = vpack.c.b16 %v607, %v606
    %v620 = vpack.c.b16 %v609, %v608
    %v621 = vpack.c.b16 %v611, %v610
    %v622 = vpack.c.b16 %v613, %v612
    %v623 = vpack.c.b16 %v615, %v614
    %632 = vmatprep.subr.bf16.mxu0 0
    %633 = vmatpush1.bf16.msra.mxu0 %v616
    %634 = vmatprep.subr.bf16.mxu0 0
    %635 = vmatpush1.bf16.msra.mxu0 %v617
    %636 = vmatprep.subr.bf16.mxu0 0
    %637 = vmatpush1.bf16.msra.mxu0 %v618
    %638 = vmatprep.subr.bf16.mxu0 0
    %639 = vmatpush1.bf16.msra.mxu0 %v619
    %640 = vmatprep.subr.bf16.mxu0 0
    %641 = vmatpush1.bf16.msra.mxu0 %v620
    %642 = vmatprep.subr.bf16.mxu0 0
    %643 = vmatpush1.bf16.msra.mxu0 %v621
    %644 = vmatprep.subr.bf16.mxu0 0
    %645 = vmatpush1.bf16.msra.mxu0 %v622
    %646 = vmatprep.subr.bf16.mxu0 0
    %647 = vmatpush1.bf16.msra.mxu0 %v623
    %648 = vmatprep.subr.bf16.mxu0 0
    %649 = vmatpush1.bf16.msra.mxu0 0
    %650 = vmatprep.subr.bf16.mxu0 0
    %651 = vmatpush1.bf16.msra.mxu0 0
    %652 = vmatprep.subr.bf16.mxu0 0
    %653 = vmatpush1.bf16.msra.mxu0 0
    %654 = vmatprep.subr.bf16.mxu0 0
    %655 = vmatpush1.bf16.msra.mxu0 0
    %656 = vmatprep.subr.bf16.mxu0 0
    %657 = vmatpush1.bf16.msra.mxu0 0
    %658 = vmatprep.subr.bf16.mxu0 0
    %659 = vmatpush1.bf16.msra.mxu0 0
    %660 = vmatprep.subr.bf16.mxu0 0
    %661 = vmatpush1.bf16.msra.mxu0 0
    %662 = vmatprep.subr.bf16.mxu0 0
    %663 = vmatpush1.bf16.msra.mxu0 0
    %664 = vmatprep.mubr.bf16.mxu0 0
    %665 = vmatmul.mubr.bf16.gmra.mrb[0].mxu0 %v382
    %v666 = vpop.f32.mrb[0].mxu0
    %v667 = vadd.f32 %v582, %v666
    %v668 = vpop.f32.mrb[0].mxu0
    %v669 = vpop.f32.mrb[0].mxu0
    %v670 = vadd.f32 %v582, %v669
    %v671 = vpop.f32.mrb[0].mxu0
    %672 = vmatprep.mubr.bf16.mxu0 0
    %673 = vmatmul.mubr.bf16.gmra.mrb[0].mxu0 %v383
    %v674 = vpop.f32.mrb[0].mxu0
    %v675 = vadd.f32 %v582, %v674
    %v676 = vpop.f32.mrb[0].mxu0
    %v677 = vpop.f32.mrb[0].mxu0
    %v678 = vadd.f32 %v582, %v677
    %v679 = vpop.f32.mrb[0].mxu0
    %680 = vdwg.mxu0
    %v681 = vrot.slane %v467, 7
    %v682 = vrot.slane %v470, 7
    %v683 = vrot.slane %v475, 7
    %v684 = vrot.slane %v478, 7
    %v685 = vsel %vm280, %v683, %v684
    %v686 = vsel %vm280, %v682, %v683
    %v687 = vsel %vm280, %v681, %v682
    %v688 = vsel %vm280, %v684, %v681
    %v689 = vsel %vm289, 0.0, %v688
    %v690 = vsel %vm290, 0.0, %v687
    %v691 = vsel %vm291, 0.0, %v686
    %v692 = vsel %vm292, 0.0, %v685
    %v693 = vadd.f32 %v667, %v689
    %v694 = vadd.f32 %v670, %v690
    %v695 = vadd.f32 %v675, %v691
    %v696 = vadd.f32 %v678, %v692
    %v697 = vrot.slane %v564, 1
    %v698 = vrot.slane %v567, 1
    %v699 = vrot.slane %v572, 1
    %v700 = vrot.slane %v575, 1
    %v701 = vsel %vm305, %v699, %v700
    %v702 = vsel %vm305, %v698, %v699
    %v703 = vsel %vm305, %v697, %v698
    %v704 = vsel %vm305, %v700, %v697
    %v705 = vsel %vm314, 0.0, %v703
    %v706 = vsel %vm315, 0.0, %v702
    %v707 = vsel %vm316, 0.0, %v701
    %v708 = vsel %vm317, 0.0, %v704
    %v709 = vadd.f32 %v693, %v705
    %v710 = vadd.f32 %v694, %v706
    %v711 = vadd.f32 %v695, %v707
    %v712 = vadd.f32 %v696, %v708
    %v713 = vmax.f32 %v709, 0.0
    %v714 = vmax.f32 %v710, 0.0
    %v715 = vmax.f32 %v711, 0.0
    %v716 = vmax.f32 %v712, 0.0
    %s717 = scalar_lea.vmem [#allocation2], 192
    %v718 = vld [vmem:[%s717] sm:$0xf]
    %v719 = vld [vmem:[%s717 + $0x4] sm:$0xf]
    %v720 = vld [vmem:[%s717 + $0x8] sm:$0xf]
    %v721 = vld [vmem:[%s717 + $0xc] sm:$0xf]
    %v722 = vld [vmem:[%s717 + $0x10] sm:$0xf]
    %v723 = vld [vmem:[%s717 + $0x14] sm:$0xf]
    %v724 = vld [vmem:[%s717 + $0x18] sm:$0xf]
    %v725 = vld [vmem:[%s717 + $0x1c] sm:$0xf]
    %v726 = vld [vmem:[%s717 + $0x20] sm:$0xf]
    %v727 = vld [vmem:[%s717 + $0x24] sm:$0xf]
    %v728 = vld [vmem:[%s717 + $0x28] sm:$0xf]
    %v729 = vld [vmem:[%s717 + $0x2c] sm:$0xf]
    %v730 = vld [vmem:[%s717 + $0x30] sm:$0xf]
    %v731 = vld [vmem:[%s717 + $0x34] sm:$0xf]
    %v732 = vld [vmem:[%s717 + $0x38] sm:$0xf]
    %v733 = vld [vmem:[%s717 + $0x3c] sm:$0xf]
    %s734 = scalar_lea.vmem [#allocation2], 256
    %v735 = vld [vmem:[%s734] sm:$0xf]
    %v736 = vld [vmem:[%s734 + $0x4] sm:$0xf]
    %v737 = vld [vmem:[%s734 + $0x8] sm:$0xf]
    %v738 = vld [vmem:[%s734 + $0xc] sm:$0xf]
    %v739 = vld [vmem:[%s734 + $0x10] sm:$0xf]
    %v740 = vld [vmem:[%s734 + $0x14] sm:$0xf]
    %v741 = vld [vmem:[%s734 + $0x18] sm:$0xf]
    %v742 = vld [vmem:[%s734 + $0x1c] sm:$0xf]
    %v743 = vld [vmem:[%s734 + $0x20] sm:$0xf]
    %v744 = vld [vmem:[%s734 + $0x24] sm:$0xf]
    %v745 = vld [vmem:[%s734 + $0x28] sm:$0xf]
    %v746 = vld [vmem:[%s734 + $0x2c] sm:$0xf]
    %v747 = vld [vmem:[%s734 + $0x30] sm:$0xf]
    %v748 = vld [vmem:[%s734 + $0x34] sm:$0xf]
    %v749 = vld [vmem:[%s734 + $0x38] sm:$0xf]
    %v750 = vld [vmem:[%s734 + $0x3c] sm:$0xf]
    %s751 = scalar_lea.vmem [#allocation2], 320
    %v752 = vld [vmem:[%s751] sm:$0xf]
    %v753 = vld [vmem:[%s751 + $0x4] sm:$0xf]
    %v754 = vld [vmem:[%s751 + $0x8] sm:$0xf]
    %v755 = vld [vmem:[%s751 + $0xc] sm:$0xf]
    %v756 = vld [vmem:[%s751 + $0x10] sm:$0xf]
    %v757 = vld [vmem:[%s751 + $0x14] sm:$0xf]
    %v758 = vld [vmem:[%s751 + $0x18] sm:$0xf]
    %v759 = vld [vmem:[%s751 + $0x1c] sm:$0xf]
    %v760 = vld [vmem:[%s751 + $0x20] sm:$0xf]
    %v761 = vld [vmem:[%s751 + $0x24] sm:$0xf]
    %v762 = vld [vmem:[%s751 + $0x28] sm:$0xf]
    %v763 = vld [vmem:[%s751 + $0x2c] sm:$0xf]
    %v764 = vld [vmem:[%s751 + $0x30] sm:$0xf]
    %v765 = vld [vmem:[%s751 + $0x34] sm:$0xf]
    %v766 = vld [vmem:[%s751 + $0x38] sm:$0xf]
    %v767 = vld [vmem:[%s751 + $0x3c] sm:$0xf]
    %s768 = scalar_lea.vmem %s3, 2
    %v769 = vld [vmem:[%s768] sm:$0x1]
    %v770 = vpack.c.bf16 %v714, %v713
    %v771 = vpack.c.bf16 %v716, %v715
    %v788 = vunpack.c.l.b16 %v718
    %v789 = vunpack.c.l.b16 %v719
    %v790 = vunpack.c.l.b16 %v720
    %v791 = vunpack.c.l.b16 %v721
    %v792 = vunpack.c.l.b16 %v722
    %v793 = vunpack.c.l.b16 %v723
    %v794 = vunpack.c.l.b16 %v724
    %v795 = vunpack.c.l.b16 %v725
    %v796 = vunpack.c.l.b16 %v726
    %v797 = vunpack.c.l.b16 %v727
    %v798 = vunpack.c.l.b16 %v728
    %v799 = vunpack.c.l.b16 %v729
    %v800 = vunpack.c.l.b16 %v730
    %v801 = vunpack.c.l.b16 %v731
    %v802 = vunpack.c.l.b16 %v732
    %v803 = vunpack.c.l.b16 %v733
    %v804 = vpack.c.b16 %v789, %v788
    %v805 = vpack.c.b16 %v791, %v790
    %v806 = vpack.c.b16 %v793, %v792
    %v807 = vpack.c.b16 %v795, %v794
    %v808 = vpack.c.b16 %v797, %v796
    %v809 = vpack.c.b16 %v799, %v798
    %v810 = vpack.c.b16 %v801, %v800
    %v811 = vpack.c.b16 %v803, %v802
    %820 = vmatprep.subr.bf16.mxu0 0
    %821 = vmatpush1.bf16.msra.mxu0 %v804
    %822 = vmatprep.subr.bf16.mxu0 0
    %823 = vmatpush1.bf16.msra.mxu0 %v805
    %824 = vmatprep.subr.bf16.mxu0 0
    %825 = vmatpush1.bf16.msra.mxu0 %v806
    %826 = vmatprep.subr.bf16.mxu0 0
    %827 = vmatpush1.bf16.msra.mxu0 %v807
    %828 = vmatprep.subr.bf16.mxu0 0
    %829 = vmatpush1.bf16.msra.mxu0 %v808
    %830 = vmatprep.subr.bf16.mxu0 0
    %831 = vmatpush1.bf16.msra.mxu0 %v809
    %832 = vmatprep.subr.bf16.mxu0 0
    %833 = vmatpush1.bf16.msra.mxu0 %v810
    %834 = vmatprep.subr.bf16.mxu0 0
    %835 = vmatpush1.bf16.msra.mxu0 %v811
    %836 = vmatprep.subr.bf16.mxu0 0
    %837 = vmatpush1.bf16.msra.mxu0 0
    %838 = vmatprep.subr.bf16.mxu0 0
    %839 = vmatpush1.bf16.msra.mxu0 0
    %840 = vmatprep.subr.bf16.mxu0 0
    %841 = vmatpush1.bf16.msra.mxu0 0
    %842 = vmatprep.subr.bf16.mxu0 0
    %843 = vmatpush1.bf16.msra.mxu0 0
    %844 = vmatprep.subr.bf16.mxu0 0
    %845 = vmatpush1.bf16.msra.mxu0 0
    %846 = vmatprep.subr.bf16.mxu0 0
    %847 = vmatpush1.bf16.msra.mxu0 0
    %848 = vmatprep.subr.bf16.mxu0 0
    %849 = vmatpush1.bf16.msra.mxu0 0
    %850 = vmatprep.subr.bf16.mxu0 0
    %851 = vmatpush1.bf16.msra.mxu0 0
    %852 = vmatprep.mubr.bf16.mxu0 0
    %853 = vmatmul.mubr.bf16.gmra.mrb[0].mxu0 %v770
    %v854 = vpop.f32.mrb[0].mxu0
    %v855 = vadd.f32 0.0, %v854
    %v856 = vpop.f32.mrb[0].mxu0
    %v857 = vpop.f32.mrb[0].mxu0
    %v858 = vadd.f32 0.0, %v857
    %v859 = vpop.f32.mrb[0].mxu0
    %860 = vmatprep.mubr.bf16.mxu0 0
    %861 = vmatmul.mubr.bf16.gmra.mrb[0].mxu0 %v771
    %v862 = vpop.f32.mrb[0].mxu0
    %v863 = vadd.f32 0.0, %v862
    %v864 = vpop.f32.mrb[0].mxu0
    %v865 = vpop.f32.mrb[0].mxu0
    %v866 = vadd.f32 0.0, %v865
    %v867 = vpop.f32.mrb[0].mxu0
    %868 = vdwg.mxu0
    %v885 = vunpack.c.l.b16 %v752
    %v886 = vunpack.c.l.b16 %v753
    %v887 = vunpack.c.l.b16 %v754
    %v888 = vunpack.c.l.b16 %v755
    %v889 = vunpack.c.l.b16 %v756
    %v890 = vunpack.c.l.b16 %v757
    %v891 = vunpack.c.l.b16 %v758
    %v892 = vunpack.c.l.b16 %v759
    %v893 = vunpack.c.l.b16 %v760
    %v894 = vunpack.c.l.b16 %v761
    %v895 = vunpack.c.l.b16 %v762
    %v896 = vunpack.c.l.b16 %v763
    %v897 = vunpack.c.l.b16 %v764
    %v898 = vunpack.c.l.b16 %v765
    %v899 = vunpack.c.l.b16 %v766
    %v900 = vunpack.c.l.b16 %v767
    %v901 = vpack.c.b16 %v886, %v885
    %v902 = vpack.c.b16 %v888, %v887
    %v903 = vpack.c.b16 %v890, %v889
    %v904 = vpack.c.b16 %v892, %v891
    %v905 = vpack.c.b16 %v894, %v893
    %v906 = vpack.c.b16 %v896, %v895
    %v907 = vpack.c.b16 %v898, %v897
    %v908 = vpack.c.b16 %v900, %v899
    %917 = vmatprep.subr.bf16.mxu0 0
    %918 = vmatpush1.bf16.msra.mxu0 %v901
    %919 = vmatprep.subr.bf16.mxu0 0
    %920 = vmatpush1.bf16.msra.mxu0 %v902
    %921 = vmatprep.subr.bf16.mxu0 0
    %922 = vmatpush1.bf16.msra.mxu0 %v903
    %923 = vmatprep.subr.bf16.mxu0 0
    %924 = vmatpush1.bf16.msra.mxu0 %v904
    %925 = vmatprep.subr.bf16.mxu0 0
    %926 = vmatpush1.bf16.msra.mxu0 %v905
    %927 = vmatprep.subr.bf16.mxu0 0
    %928 = vmatpush1.bf16.msra.mxu0 %v906
    %929 = vmatprep.subr.bf16.mxu0 0
    %930 = vmatpush1.bf16.msra.mxu0 %v907
    %931 = vmatprep.subr.bf16.mxu0 0
    %932 = vmatpush1.bf16.msra.mxu0 %v908
    %933 = vmatprep.subr.bf16.mxu0 0
    %934 = vmatpush1.bf16.msra.mxu0 0
    %935 = vmatprep.subr.bf16.mxu0 0
    %936 = vmatpush1.bf16.msra.mxu0 0
    %937 = vmatprep.subr.bf16.mxu0 0
    %938 = vmatpush1.bf16.msra.mxu0 0
    %939 = vmatprep.subr.bf16.mxu0 0
    %940 = vmatpush1.bf16.msra.mxu0 0
    %941 = vmatprep.subr.bf16.mxu0 0
    %942 = vmatpush1.bf16.msra.mxu0 0
    %943 = vmatprep.subr.bf16.mxu0 0
    %944 = vmatpush1.bf16.msra.mxu0 0
    %945 = vmatprep.subr.bf16.mxu0 0
    %946 = vmatpush1.bf16.msra.mxu0 0
    %947 = vmatprep.subr.bf16.mxu0 0
    %948 = vmatpush1.bf16.msra.mxu0 0
    %949 = vmatprep.mubr.bf16.mxu0 0
    %950 = vmatmul.mubr.bf16.gmra.mrb[0].mxu0 %v770
    %v951 = vpop.f32.mrb[0].mxu0
    %v952 = vadd.f32 0.0, %v951
    %v953 = vpop.f32.mrb[0].mxu0
    %v954 = vpop.f32.mrb[0].mxu0
    %v955 = vadd.f32 0.0, %v954
    %v956 = vpop.f32.mrb[0].mxu0
    %957 = vmatprep.mubr.bf16.mxu0 0
    %958 = vmatmul.mubr.bf16.gmra.mrb[0].mxu0 %v771
    %v959 = vpop.f32.mrb[0].mxu0
    %v960 = vadd.f32 0.0, %v959
    %v961 = vpop.f32.mrb[0].mxu0
    %v962 = vpop.f32.mrb[0].mxu0
    %v963 = vadd.f32 0.0, %v962
    %v964 = vpop.f32.mrb[0].mxu0
    %965 = vdwg.mxu0
    %v967 = vlaneseq
    %v968 = vshrl.u32 %v967, 7
    %v969 = vsub.s32 0, %v968
    %v970 = vrot.slane %v769, %v969
    %v988 = vunpack.c.l.b16 %v735
    %v989 = vunpack.c.l.b16 %v736
    %v990 = vunpack.c.l.b16 %v737
    %v991 = vunpack.c.l.b16 %v738
    %v992 = vunpack.c.l.b16 %v739
    %v993 = vunpack.c.l.b16 %v740
    %v994 = vunpack.c.l.b16 %v741
    %v995 = vunpack.c.l.b16 %v742
    %v996 = vunpack.c.l.b16 %v743
    %v997 = vunpack.c.l.b16 %v744
    %v998 = vunpack.c.l.b16 %v745
    %v999 = vunpack.c.l.b16 %v746
    %v1000 = vunpack.c.l.b16 %v747
    %v1001 = vunpack.c.l.b16 %v748
    %v1002 = vunpack.c.l.b16 %v749
    %v1003 = vunpack.c.l.b16 %v750
    %v1004 = vpack.c.b16 %v989, %v988
    %v1005 = vpack.c.b16 %v991, %v990
    %v1006 = vpack.c.b16 %v993, %v992
    %v1007 = vpack.c.b16 %v995, %v994
    %v1008 = vpack.c.b16 %v997, %v996
    %v1009 = vpack.c.b16 %v999, %v998
    %v1010 = vpack.c.b16 %v1001, %v1000
    %v1011 = vpack.c.b16 %v1003, %v1002
    %1020 = vmatprep.subr.bf16.mxu0 0
    %1021 = vmatpush1.bf16.msra.mxu0 %v1004
    %1022 = vmatprep.subr.bf16.mxu0 0
    %1023 = vmatpush1.bf16.msra.mxu0 %v1005
    %1024 = vmatprep.subr.bf16.mxu0 0
    %1025 = vmatpush1.bf16.msra.mxu0 %v1006
    %1026 = vmatprep.subr.bf16.mxu0 0
    %1027 = vmatpush1.bf16.msra.mxu0 %v1007
    %1028 = vmatprep.subr.bf16.mxu0 0
    %1029 = vmatpush1.bf16.msra.mxu0 %v1008
    %1030 = vmatprep.subr.bf16.mxu0 0
    %1031 = vmatpush1.bf16.msra.mxu0 %v1009
    %1032 = vmatprep.subr.bf16.mxu0 0
    %1033 = vmatpush1.bf16.msra.mxu0 %v1010
    %1034 = vmatprep.subr.bf16.mxu0 0
    %1035 = vmatpush1.bf16.msra.mxu0 %v1011
    %1036 = vmatprep.subr.bf16.mxu0 0
    %1037 = vmatpush1.bf16.msra.mxu0 0
    %1038 = vmatprep.subr.bf16.mxu0 0
    %1039 = vmatpush1.bf16.msra.mxu0 0
    %1040 = vmatprep.subr.bf16.mxu0 0
    %1041 = vmatpush1.bf16.msra.mxu0 0
    %1042 = vmatprep.subr.bf16.mxu0 0
    %1043 = vmatpush1.bf16.msra.mxu0 0
    %1044 = vmatprep.subr.bf16.mxu0 0
    %1045 = vmatpush1.bf16.msra.mxu0 0
    %1046 = vmatprep.subr.bf16.mxu0 0
    %1047 = vmatpush1.bf16.msra.mxu0 0
    %1048 = vmatprep.subr.bf16.mxu0 0
    %1049 = vmatpush1.bf16.msra.mxu0 0
    %1050 = vmatprep.subr.bf16.mxu0 0
    %1051 = vmatpush1.bf16.msra.mxu0 0
    %1052 = vmatprep.mubr.bf16.mxu0 0
    %1053 = vmatmul.mubr.bf16.gmra.mrb[0].mxu0 %v770
    %v1054 = vpop.f32.mrb[0].mxu0
    %v1055 = vadd.f32 %v970, %v1054
    %v1056 = vpop.f32.mrb[0].mxu0
    %v1057 = vpop.f32.mrb[0].mxu0
    %v1058 = vadd.f32 %v970, %v1057
    %v1059 = vpop.f32.mrb[0].mxu0
    %1060 = vmatprep.mubr.bf16.mxu0 0
    %1061 = vmatmul.mubr.bf16.gmra.mrb[0].mxu0 %v771
    %v1062 = vpop.f32.mrb[0].mxu0
    %v1063 = vadd.f32 %v970, %v1062
    %v1064 = vpop.f32.mrb[0].mxu0
    %v1065 = vpop.f32.mrb[0].mxu0
    %v1066 = vadd.f32 %v970, %v1065
    %v1067 = vpop.f32.mrb[0].mxu0
    %1068 = vdwg.mxu0
    %v1069 = vrot.slane %v855, 7
    %v1070 = vrot.slane %v858, 7
    %v1071 = vrot.slane %v863, 7
    %v1072 = vrot.slane %v866, 7
    %v1073 = vsel %vm280, %v1071, %v1072
    %v1074 = vsel %vm280, %v1070, %v1071
    %v1075 = vsel %vm280, %v1069, %v1070
    %v1076 = vsel %vm280, %v1072, %v1069
    %v1077 = vsel %vm289, 0.0, %v1076
    %v1078 = vsel %vm290, 0.0, %v1075
    %v1079 = vsel %vm291, 0.0, %v1074
    %v1080 = vsel %vm292, 0.0, %v1073
    %v1081 = vadd.f32 %v1055, %v1077
    %v1082 = vadd.f32 %v1058, %v1078
    %v1083 = vadd.f32 %v1063, %v1079
    %v1084 = vadd.f32 %v1066, %v1080
    %v1085 = vrot.slane %v952, 1
    %v1086 = vrot.slane %v955, 1
    %v1087 = vrot.slane %v960, 1
    %v1088 = vrot.slane %v963, 1
    %v1089 = vsel %vm305, %v1087, %v1088
    %v1090 = vsel %vm305, %v1086, %v1087
    %v1091 = vsel %vm305, %v1085, %v1086
    %v1092 = vsel %vm305, %v1088, %v1085
    %v1093 = vsel %vm314, 0.0, %v1091
    %v1094 = vsel %vm315, 0.0, %v1090
    %v1095 = vsel %vm316, 0.0, %v1089
    %v1096 = vsel %vm317, 0.0, %v1092
    %v1097 = vadd.f32 %v1081, %v1093
    %v1098 = vadd.f32 %v1082, %v1094
    %v1099 = vadd.f32 %v1083, %v1095
    %v1100 = vadd.f32 %v1084, %v1096
    %v1101 = vmax.f32 %v1097, 0.0
    %v1102 = vmax.f32 %v1098, 0.0
    %v1103 = vmax.f32 %v1099, 0.0
    %v1104 = vmax.f32 %v1100, 0.0
    %1105 = vst [vmem:[#allocation5] sm:$0xff] %v1101
    %1106 = vst [vmem:[#allocation5 + $0x8] sm:$0xff] %v1102
    %1107 = vst [vmem:[#allocation5 + $0x10] sm:$0xff] %v1103
    %1108 = vst [vmem:[#allocation5 + $0x18] sm:$0xff] %v1104
    // Predicated region
    $region22: #{tpu_custom_call.1} parent=1 // pred_check
      _
    $region23: #{tpu_custom_call.1} parent=1 // pred_check_branch
      %1110 = sbr.rel (0) target = $region25
    $region24: #{tpu_custom_call.1} parent=1 // pred_region
      %s1112 = ssub.s32 512, 512
      %1113 = vsyncadd [#allocation4], %s1112
      %s1114 = sshll.u32 [#allocation5], 4
      %s1115 = int_to_ptr.vmem [resolvable:$true] %s1114
      %1120 = dma.vmem_to_hbm [thread:$0]  %s1115, 512, %s4, [#allocation4], 128, 128, 8
    $region25: #{tpu_custom_call.1} parent=1 // pred_fallthru
      _
    // Predicated region
    $region26: #{tpu_custom_call.1} parent=1 // pred_check
      _
    $region27: #{tpu_custom_call.1} parent=1 // pred_check_branch
      %1122 = sbr.rel (0) target = $region29
    $region28: #{tpu_custom_call.1} parent=1 // pred_region
      %1123 = dma.done [#allocation4], 512
    $region29: #{tpu_custom_call.1} parent=1 // pred_fallthru
      _
    %1124 = vsyncpa [#allocation3], 1
    %1125 = vsyncpa [#allocation4], 1

</llo_original>
